<compile_context>
chip_gen: v5e
topology: v5e:2x2
jax: 0.10.0
libtpu: 0.0.40
codegen_flags: <defaults>
</compile_context>

<pallas_src>
import jax
import jax.numpy as jnp
from jax.experimental import pallas as pl
from jax.experimental.pallas import tpu as pltpu

OUT_PAD = 128  # lane-dense output width (final layer zero-padded to this)


def _round_up(n, m):
    return (n + m - 1) // m * m


def _dep_actor_kernel(
    x_ref,                     # [TB, T*IN]        bf16
    w1_ref, b1_ref,            # [T*IN, T*32] bf16, [1, T*32] f32   (state_encoder L1, block-diag)
    w2_ref, b2_ref,            # [T*32, T*16]     , [1, T*16]
    w3_ref, b3_ref,            # [T*16, T*4]      , [1, T*4]
    w4_ref, b4_ref,            # [T*4,  T]        , [1, T]          (Linear(4,1), block-diag)
    c1_ref, d1_ref,            # [T, 64]   bf16   , [1, 64]  f32    (network_controller)
    c2_ref, d2_ref,            # [64, 32]         , [1, 32]
    c3_ref, d3_ref,            # [32, 16]         , [1, 16]
    c4_ref, d4_ref,            # [16, OUT_PAD]    , [1, OUT_PAD]    (zero-padded columns)
    y_ref,                     # [TB, OUT_PAD]  f32
):
    def leaky(z):              # nn.LeakyReLU() default negative_slope = 0.01
        return jnp.where(z >= 0.0, z, 0.01 * z)

    def mm(h, w_ref, b_ref):
        # bf16 MXU matmul, f32 accumulation, f32 bias add.
        return jnp.dot(h.astype(jnp.bfloat16), w_ref[...],
                       preferred_element_type=jnp.float32) + b_ref[...]

    h = x_ref[...]                         # [TB, T*IN]  (bf16)
    # state_encoder applied to every timestep via block-diagonal weights.
    h = leaky(mm(h, w1_ref, b1_ref))       # [TB, T*32]
    h = leaky(mm(h, w2_ref, b2_ref))       # [TB, T*16]
    h = leaky(mm(h, w3_ref, b3_ref))       # [TB, T*4]
    e = mm(h, w4_ref, b4_ref)              # [TB, T]   (encoded states, no activation)
    # network_controller.
    g = leaky(mm(e, c1_ref, d1_ref))       # [TB, 64]
    g = leaky(mm(g, c2_ref, d2_ref))       # [TB, 32]
    g = leaky(mm(g, c3_ref, d3_ref))       # [TB, 16]
    y_ref[...] = jnp.tanh(mm(g, c4_ref, d4_ref))   # [TB, OUT_PAD], lane-dense store


def init_params(key, input_size, output_size, T):
    """Module-faithful f32 parameters (PyTorch nn.Linear default init, W stored [in, out])."""
    def lin(kw, kb, fan_in, fan_out):
        bound = 1.0 / jnp.sqrt(jnp.float32(fan_in))
        w = jax.random.uniform(kw, (fan_in, fan_out), jnp.float32, -bound, bound)
        b = jax.random.uniform(kb, (1, fan_out), jnp.float32, -bound, bound)
        return w, b

    keys = jax.random.split(key, 16)
    p = {}
    # state_encoder: IN -> 32 -> 16 -> 4 -> 1
    p["we1"], p["be1"] = lin(keys[0], keys[1], input_size, 32)
    p["we2"], p["be2"] = lin(keys[2], keys[3], 32, 16)
    p["we3"], p["be3"] = lin(keys[4], keys[5], 16, 4)
    p["we4"], p["be4"] = lin(keys[6], keys[7], 4, 1)
    # network_controller: T -> 64 -> 32 -> 16 -> OUT
    p["wc1"], p["bc1"] = lin(keys[8], keys[9], T, 64)
    p["wc2"], p["bc2"] = lin(keys[10], keys[11], 64, 32)
    p["wc3"], p["bc3"] = lin(keys[12], keys[13], 32, 16)
    p["wc4"], p["bc4"] = lin(keys[14], keys[15], 16, output_size)
    return p


def pack_params(p, T):
    """Pack module params into the kernel layout (block-diag encoder, bf16 weights,
    f32 biases, lane-dense-padded final layer)."""
    def block_diag_repeat(w):
        k, n = w.shape
        eye = jnp.eye(T, dtype=w.dtype)
        return jnp.einsum("st,kn->sktn", eye, w).reshape(T * k, T * n)

    def tile_bias(b):
        return jnp.tile(b, (1, T))

    out = p["wc4"].shape[1]
    wc4p = jnp.zeros((p["wc4"].shape[0], OUT_PAD), jnp.float32).at[:, :out].set(p["wc4"])
    bc4p = jnp.zeros((1, OUT_PAD), jnp.float32).at[:, :out].set(p["bc4"])

    packed = {
        "w1": block_diag_repeat(p["we1"]).astype(jnp.bfloat16), "b1": tile_bias(p["be1"]),
        "w2": block_diag_repeat(p["we2"]).astype(jnp.bfloat16), "b2": tile_bias(p["be2"]),
        "w3": block_diag_repeat(p["we3"]).astype(jnp.bfloat16), "b3": tile_bias(p["be3"]),
        "w4": block_diag_repeat(p["we4"]).astype(jnp.bfloat16), "b4": tile_bias(p["be4"]),
        "c1": p["wc1"].astype(jnp.bfloat16), "d1": p["bc1"],
        "c2": p["wc2"].astype(jnp.bfloat16), "d2": p["bc2"],
        "c3": p["wc3"].astype(jnp.bfloat16), "d3": p["bc3"],
        "c4": wc4p.astype(jnp.bfloat16), "d4": bc4p,
        "out_size": out,
        "T": T,
    }
    return packed


def dep_actor_only_network(x3d, packed, *, tile_b=256):
    """x3d: [B, T, IN] f32 observation windows -> actions [B, OUT] f32."""
    B, T, IN = x3d.shape
    out_size = packed["out_size"]

    # Flatten the per-window timesteps into the feature axis (row-major, so
    # x2d[b, t*IN + i] == x3d[b, t, i]); cast to bf16 to halve input DMA bytes.
    x2d = x3d.reshape(B, T * IN).astype(jnp.bfloat16)

    # Batch tile: multiple of 8 sublanes; 256 fills the v6e/v7x MXU rows
    # (use tile_b=128 on v5e). Pad B up to a multiple of the tile.
    tb = min(tile_b, _round_up(B, 8))
    b_pad = _round_up(B, tb)
    if b_pad != B:
        x2d = jnp.pad(x2d, ((0, b_pad - B), (0, 0)))
    nb = b_pad // tb

    weight_order = ("w1", "b1", "w2", "b2", "w3", "b3", "w4", "b4",
                    "c1", "d1", "c2", "d2", "c3", "d3", "c4", "d4")
    weights = tuple(packed[k] for k in weight_order)

    in_specs = [pl.BlockSpec((tb, T * IN), lambda i: (i, 0))]
    # Full-array weight blocks with a constant index_map -> weights stay
    # resident in VMEM across grid steps (no per-step re-DMA).
    in_specs += [pl.BlockSpec(w.shape, lambda i: (0, 0)) for w in weights]
    out_specs = pl.BlockSpec((tb, OUT_PAD), lambda i: (i, 0))

    flops = 2 * b_pad * (
        (T * IN) * (T * 32) + (T * 32) * (T * 16) + (T * 16) * (T * 4) + (T * 4) * T
        + T * 64 + 64 * 32 + 32 * 16 + 16 * OUT_PAD)
    transcendentals = b_pad * OUT_PAD
    bytes_accessed = (x2d.size * 2 + b_pad * OUT_PAD * 4
                      + sum(int(w.size) * w.dtype.itemsize for w in weights))
    cost = pl.CostEstimate(flops=int(flops),
                           transcendentals=int(transcendentals),
                           bytes_accessed=int(bytes_accessed))

    y_pad = pl.pallas_call(
        _dep_actor_kernel,
        grid=(nb,),
        in_specs=in_specs,
        out_specs=out_specs,
        out_shape=jax.ShapeDtypeStruct((b_pad, OUT_PAD), jnp.float32),
        compiler_params=pltpu.CompilerParams(
            dimension_semantics=("parallel",),      # megacore sharding on v7x
            vmem_limit_bytes=32 * 1024 * 1024,      # generous, safe on v5e/v6e/v7x
        ),
        cost_estimate=cost,
    )(x2d, *weights)

    return y_pad[:B, :out_size]


def _reference(x3d, p):
    """Pure-JAX f32 reference of DEPActor.only_network."""
    def leaky(z):
        return jnp.where(z >= 0.0, z, 0.01 * z)

    B, T, IN = x3d.shape
    h = x3d.reshape(B * T, IN)
    h = leaky(h @ p["we1"] + p["be1"])
    h = leaky(h @ p["we2"] + p["be2"])
    h = leaky(h @ p["we3"] + p["be3"])
    e = (h @ p["we4"] + p["be4"]).reshape(B, T)   # squeeze of [B, T, 1]
    g = leaky(e @ p["wc1"] + p["bc1"])
    g = leaky(g @ p["wc2"] + p["bc2"])
    g = leaky(g @ p["wc3"] + p["bc3"])
    return jnp.tanh(g @ p["wc4"] + p["bc4"])


if __name__ == "__main__":
    input_size, output_size = 16, 8
    tau, delta_t = 8, 1                 # DEPLayer -> BatchedDEP(8, ..., delta_t=1, ...)
    T = tau + delta_t                   # DEPActor.batch_size = 9
    batch = 4                           # observation windows (only_network path)

    key = jax.random.PRNGKey(0)
    k_params, k_x = jax.random.split(key)
    params = init_params(k_params, input_size, output_size, T)
    x = jax.random.normal(k_x, (batch, T, input_size), jnp.float32)

    packed = pack_params(params, T)
    y = dep_actor_only_network(x, packed)
    y = jax.block_until_ready(y)

    y_ref = _reference(x, params)
    assert y.shape == (batch, output_size)
    # bf16 matmul inputs with f32 accumulation -> loosened tolerance vs f32 reference.
    assert jnp.allclose(y, y_ref, atol=3e-2), "output mismatch vs JAX reference"

    print("KERNEL_OK")
</pallas_src>

<mosaic_0001>
module attributes {stable_mosaic.version = 11 : i64} {
  func.func @_dep_actor_kernel(%arg0: i32, %arg1: memref<8x144xbf16, #tpu.memory_space<vmem>>, %arg2: memref<144x288xbf16, #tpu.memory_space<vmem>>, %arg3: memref<1x288xf32, #tpu.memory_space<vmem>>, %arg4: memref<288x144xbf16, #tpu.memory_space<vmem>>, %arg5: memref<1x144xf32, #tpu.memory_space<vmem>>, %arg6: memref<144x36xbf16, #tpu.memory_space<vmem>>, %arg7: memref<1x36xf32, #tpu.memory_space<vmem>>, %arg8: memref<36x9xbf16, #tpu.memory_space<vmem>>, %arg9: memref<1x9xf32, #tpu.memory_space<vmem>>, %arg10: memref<9x64xbf16, #tpu.memory_space<vmem>>, %arg11: memref<1x64xf32, #tpu.memory_space<vmem>>, %arg12: memref<64x32xbf16, #tpu.memory_space<vmem>>, %arg13: memref<1x32xf32, #tpu.memory_space<vmem>>, %arg14: memref<32x16xbf16, #tpu.memory_space<vmem>>, %arg15: memref<1x16xf32, #tpu.memory_space<vmem>>, %arg16: memref<16x128xbf16, #tpu.memory_space<vmem>>, %arg17: memref<1x128xf32, #tpu.memory_space<vmem>>, %arg18: memref<8x128xf32, #tpu.memory_space<vmem>>) attributes {dimension_semantics = [#tpu.dimension_semantics<parallel>], iteration_bounds = array<i64: 1>, scalar_prefetch = 0 : i64, scratch_operands = 0 : i64, tpu.core_type = #tpu.core_type<tc>, window_params = [{transform_indices = @transform_0, window_bounds = array<i64: 8, 144>}, {pipeline_mode = #tpu.pipeline_mode<synchronous>, transform_indices = @transform_1, window_bounds = array<i64: 144, 288>}, {pipeline_mode = #tpu.pipeline_mode<synchronous>, transform_indices = @transform_2, window_bounds = array<i64: 1, 288>}, {pipeline_mode = #tpu.pipeline_mode<synchronous>, transform_indices = @transform_3, window_bounds = array<i64: 288, 144>}, {pipeline_mode = #tpu.pipeline_mode<synchronous>, transform_indices = @transform_4, window_bounds = array<i64: 1, 144>}, {pipeline_mode = #tpu.pipeline_mode<synchronous>, transform_indices = @transform_5, window_bounds = array<i64: 144, 36>}, {pipeline_mode = #tpu.pipeline_mode<synchronous>, transform_indices = @transform_6, window_bounds = array<i64: 1, 36>}, {pipeline_mode = #tpu.pipeline_mode<synchronous>, transform_indices = @transform_7, window_bounds = array<i64: 36, 9>}, {pipeline_mode = #tpu.pipeline_mode<synchronous>, transform_indices = @transform_8, window_bounds = array<i64: 1, 9>}, {pipeline_mode = #tpu.pipeline_mode<synchronous>, transform_indices = @transform_9, window_bounds = array<i64: 9, 64>}, {pipeline_mode = #tpu.pipeline_mode<synchronous>, transform_indices = @transform_10, window_bounds = array<i64: 1, 64>}, {pipeline_mode = #tpu.pipeline_mode<synchronous>, transform_indices = @transform_11, window_bounds = array<i64: 64, 32>}, {pipeline_mode = #tpu.pipeline_mode<synchronous>, transform_indices = @transform_12, window_bounds = array<i64: 1, 32>}, {pipeline_mode = #tpu.pipeline_mode<synchronous>, transform_indices = @transform_13, window_bounds = array<i64: 32, 16>}, {pipeline_mode = #tpu.pipeline_mode<synchronous>, transform_indices = @transform_14, window_bounds = array<i64: 1, 16>}, {pipeline_mode = #tpu.pipeline_mode<synchronous>, transform_indices = @transform_15, window_bounds = array<i64: 16, 128>}, {pipeline_mode = #tpu.pipeline_mode<synchronous>, transform_indices = @transform_16, window_bounds = array<i64: 1, 128>}, {transform_indices = @transform_17, window_bounds = array<i64: 8, 128>}]} {
    %c0 = arith.constant 0 : index
    %c0_0 = arith.constant 0 : index
    %0 = vector.load %arg1[%c0, %c0_0] : memref<8x144xbf16, #tpu.memory_space<vmem>>, vector<8x144xbf16>
    %c0_1 = arith.constant 0 : index
    %c0_2 = arith.constant 0 : index
    %1 = vector.load %arg2[%c0_1, %c0_2] : memref<144x288xbf16, #tpu.memory_space<vmem>>, vector<144x288xbf16>
    %cst = arith.constant dense<0.000000e+00> : vector<8x288xf32>
    %2 = tpu.matmul %0, %1, %cst {dimension_numbers = #tpu.dot_dimension_numbers<[1], [0], [0], [1], [0, 0, 1, 1], [], []>} : vector<8x144xbf16>, vector<144x288xbf16>, vector<8x288xf32> -> vector<8x288xf32>
    %c0_3 = arith.constant 0 : index
    %c0_4 = arith.constant 0 : index
    %3 = vector.load %arg3[%c0_3, %c0_4] : memref<1x288xf32, #tpu.memory_space<vmem>>, vector<1x288xf32>
    %4 = vector.broadcast %3 : vector<1x288xf32> to vector<8x288xf32>
    %5 = arith.addf %2, %4 : vector<8x288xf32>
    %cst_5 = arith.constant 0.000000e+00 : f32
    %6 = vector.broadcast %cst_5 : f32 to vector<8x288xf32>
    %7 = arith.cmpf oge, %5, %6 : vector<8x288xf32>
    %cst_6 = arith.constant 0.00999999977 : f32
    %8 = vector.broadcast %cst_6 : f32 to vector<8x288xf32>
    %9 = arith.mulf %8, %5 : vector<8x288xf32>
    %10 = arith.select %7, %5, %9 : vector<8x288xi1>, vector<8x288xf32>
    %11 = arith.truncf %10 : vector<8x288xf32> to vector<8x288xbf16>
    %c0_7 = arith.constant 0 : index
    %c0_8 = arith.constant 0 : index
    %12 = vector.load %arg4[%c0_7, %c0_8] : memref<288x144xbf16, #tpu.memory_space<vmem>>, vector<288x144xbf16>
    %cst_9 = arith.constant dense<0.000000e+00> : vector<8x144xf32>
    %13 = tpu.matmul %11, %12, %cst_9 {dimension_numbers = #tpu.dot_dimension_numbers<[1], [0], [0], [1], [0, 0, 1, 1], [], []>} : vector<8x288xbf16>, vector<288x144xbf16>, vector<8x144xf32> -> vector<8x144xf32>
    %c0_10 = arith.constant 0 : index
    %c0_11 = arith.constant 0 : index
    %14 = vector.load %arg5[%c0_10, %c0_11] : memref<1x144xf32, #tpu.memory_space<vmem>>, vector<1x144xf32>
    %15 = vector.broadcast %14 : vector<1x144xf32> to vector<8x144xf32>
    %16 = arith.addf %13, %15 : vector<8x144xf32>
    %cst_12 = arith.constant 0.000000e+00 : f32
    %17 = vector.broadcast %cst_12 : f32 to vector<8x144xf32>
    %18 = arith.cmpf oge, %16, %17 : vector<8x144xf32>
    %cst_13 = arith.constant 0.00999999977 : f32
    %19 = vector.broadcast %cst_13 : f32 to vector<8x144xf32>
    %20 = arith.mulf %19, %16 : vector<8x144xf32>
    %21 = arith.select %18, %16, %20 : vector<8x144xi1>, vector<8x144xf32>
    %22 = arith.truncf %21 : vector<8x144xf32> to vector<8x144xbf16>
    %c0_14 = arith.constant 0 : index
    %c0_15 = arith.constant 0 : index
    %23 = vector.load %arg6[%c0_14, %c0_15] : memref<144x36xbf16, #tpu.memory_space<vmem>>, vector<144x36xbf16>
    %cst_16 = arith.constant dense<0.000000e+00> : vector<8x36xf32>
    %24 = tpu.matmul %22, %23, %cst_16 {dimension_numbers = #tpu.dot_dimension_numbers<[1], [0], [0], [1], [0, 0, 1, 1], [], []>} : vector<8x144xbf16>, vector<144x36xbf16>, vector<8x36xf32> -> vector<8x36xf32>
    %c0_17 = arith.constant 0 : index
    %c0_18 = arith.constant 0 : index
    %25 = vector.load %arg7[%c0_17, %c0_18] : memref<1x36xf32, #tpu.memory_space<vmem>>, vector<1x36xf32>
    %26 = vector.broadcast %25 : vector<1x36xf32> to vector<8x36xf32>
    %27 = arith.addf %24, %26 : vector<8x36xf32>
    %cst_19 = arith.constant 0.000000e+00 : f32
    %28 = vector.broadcast %cst_19 : f32 to vector<8x36xf32>
    %29 = arith.cmpf oge, %27, %28 : vector<8x36xf32>
    %cst_20 = arith.constant 0.00999999977 : f32
    %30 = vector.broadcast %cst_20 : f32 to vector<8x36xf32>
    %31 = arith.mulf %30, %27 : vector<8x36xf32>
    %32 = arith.select %29, %27, %31 : vector<8x36xi1>, vector<8x36xf32>
    %33 = arith.truncf %32 : vector<8x36xf32> to vector<8x36xbf16>
    %c0_21 = arith.constant 0 : index
    %c0_22 = arith.constant 0 : index
    %34 = vector.load %arg8[%c0_21, %c0_22] : memref<36x9xbf16, #tpu.memory_space<vmem>>, vector<36x9xbf16>
    %cst_23 = arith.constant dense<0.000000e+00> : vector<8x9xf32>
    %35 = tpu.matmul %33, %34, %cst_23 {dimension_numbers = #tpu.dot_dimension_numbers<[1], [0], [0], [1], [0, 0, 1, 1], [], []>} : vector<8x36xbf16>, vector<36x9xbf16>, vector<8x9xf32> -> vector<8x9xf32>
    %c0_24 = arith.constant 0 : index
    %c0_25 = arith.constant 0 : index
    %36 = vector.load %arg9[%c0_24, %c0_25] : memref<1x9xf32, #tpu.memory_space<vmem>>, vector<1x9xf32>
    %37 = vector.broadcast %36 : vector<1x9xf32> to vector<8x9xf32>
    %38 = arith.addf %35, %37 : vector<8x9xf32>
    %39 = arith.truncf %38 : vector<8x9xf32> to vector<8x9xbf16>
    %c0_26 = arith.constant 0 : index
    %c0_27 = arith.constant 0 : index
    %40 = vector.load %arg10[%c0_26, %c0_27] : memref<9x64xbf16, #tpu.memory_space<vmem>>, vector<9x64xbf16>
    %cst_28 = arith.constant dense<0.000000e+00> : vector<8x64xf32>
    %41 = tpu.matmul %39, %40, %cst_28 {dimension_numbers = #tpu.dot_dimension_numbers<[1], [0], [0], [1], [0, 0, 1, 1], [], []>} : vector<8x9xbf16>, vector<9x64xbf16>, vector<8x64xf32> -> vector<8x64xf32>
    %c0_29 = arith.constant 0 : index
    %c0_30 = arith.constant 0 : index
    %42 = vector.load %arg11[%c0_29, %c0_30] : memref<1x64xf32, #tpu.memory_space<vmem>>, vector<1x64xf32>
    %43 = vector.broadcast %42 : vector<1x64xf32> to vector<8x64xf32>
    %44 = arith.addf %41, %43 : vector<8x64xf32>
    %cst_31 = arith.constant 0.000000e+00 : f32
    %45 = vector.broadcast %cst_31 : f32 to vector<8x64xf32>
    %46 = arith.cmpf oge, %44, %45 : vector<8x64xf32>
    %cst_32 = arith.constant 0.00999999977 : f32
    %47 = vector.broadcast %cst_32 : f32 to vector<8x64xf32>
    %48 = arith.mulf %47, %44 : vector<8x64xf32>
    %49 = arith.select %46, %44, %48 : vector<8x64xi1>, vector<8x64xf32>
    %50 = arith.truncf %49 : vector<8x64xf32> to vector<8x64xbf16>
    %c0_33 = arith.constant 0 : index
    %c0_34 = arith.constant 0 : index
    %51 = vector.load %arg12[%c0_33, %c0_34] : memref<64x32xbf16, #tpu.memory_space<vmem>>, vector<64x32xbf16>
    %cst_35 = arith.constant dense<0.000000e+00> : vector<8x32xf32>
    %52 = tpu.matmul %50, %51, %cst_35 {dimension_numbers = #tpu.dot_dimension_numbers<[1], [0], [0], [1], [0, 0, 1, 1], [], []>} : vector<8x64xbf16>, vector<64x32xbf16>, vector<8x32xf32> -> vector<8x32xf32>
    %c0_36 = arith.constant 0 : index
    %c0_37 = arith.constant 0 : index
    %53 = vector.load %arg13[%c0_36, %c0_37] : memref<1x32xf32, #tpu.memory_space<vmem>>, vector<1x32xf32>
    %54 = vector.broadcast %53 : vector<1x32xf32> to vector<8x32xf32>
    %55 = arith.addf %52, %54 : vector<8x32xf32>
    %cst_38 = arith.constant 0.000000e+00 : f32
    %56 = vector.broadcast %cst_38 : f32 to vector<8x32xf32>
    %57 = arith.cmpf oge, %55, %56 : vector<8x32xf32>
    %cst_39 = arith.constant 0.00999999977 : f32
    %58 = vector.broadcast %cst_39 : f32 to vector<8x32xf32>
    %59 = arith.mulf %58, %55 : vector<8x32xf32>
    %60 = arith.select %57, %55, %59 : vector<8x32xi1>, vector<8x32xf32>
    %61 = arith.truncf %60 : vector<8x32xf32> to vector<8x32xbf16>
    %c0_40 = arith.constant 0 : index
    %c0_41 = arith.constant 0 : index
    %62 = vector.load %arg14[%c0_40, %c0_41] : memref<32x16xbf16, #tpu.memory_space<vmem>>, vector<32x16xbf16>
    %cst_42 = arith.constant dense<0.000000e+00> : vector<8x16xf32>
    %63 = tpu.matmul %61, %62, %cst_42 {dimension_numbers = #tpu.dot_dimension_numbers<[1], [0], [0], [1], [0, 0, 1, 1], [], []>} : vector<8x32xbf16>, vector<32x16xbf16>, vector<8x16xf32> -> vector<8x16xf32>
    %c0_43 = arith.constant 0 : index
    %c0_44 = arith.constant 0 : index
    %64 = vector.load %arg15[%c0_43, %c0_44] : memref<1x16xf32, #tpu.memory_space<vmem>>, vector<1x16xf32>
    %65 = vector.broadcast %64 : vector<1x16xf32> to vector<8x16xf32>
    %66 = arith.addf %63, %65 : vector<8x16xf32>
    %cst_45 = arith.constant 0.000000e+00 : f32
    %67 = vector.broadcast %cst_45 : f32 to vector<8x16xf32>
    %68 = arith.cmpf oge, %66, %67 : vector<8x16xf32>
    %cst_46 = arith.constant 0.00999999977 : f32
    %69 = vector.broadcast %cst_46 : f32 to vector<8x16xf32>
    %70 = arith.mulf %69, %66 : vector<8x16xf32>
    %71 = arith.select %68, %66, %70 : vector<8x16xi1>, vector<8x16xf32>
    %72 = arith.truncf %71 : vector<8x16xf32> to vector<8x16xbf16>
    %c0_47 = arith.constant 0 : index
    %c0_48 = arith.constant 0 : index
    %73 = vector.load %arg16[%c0_47, %c0_48] : memref<16x128xbf16, #tpu.memory_space<vmem>>, vector<16x128xbf16>
    %cst_49 = arith.constant dense<0.000000e+00> : vector<8x128xf32>
    %74 = tpu.matmul %72, %73, %cst_49 {dimension_numbers = #tpu.dot_dimension_numbers<[1], [0], [0], [1], [0, 0, 1, 1], [], []>} : vector<8x16xbf16>, vector<16x128xbf16>, vector<8x128xf32> -> vector<8x128xf32>
    %c0_50 = arith.constant 0 : index
    %c0_51 = arith.constant 0 : index
    %75 = vector.load %arg17[%c0_50, %c0_51] : memref<1x128xf32, #tpu.memory_space<vmem>>, vector<1x128xf32>
    %76 = vector.broadcast %75 : vector<1x128xf32> to vector<8x128xf32>
    %77 = arith.addf %74, %76 : vector<8x128xf32>
    %78 = math.tanh %77 : vector<8x128xf32>
    %c0_52 = arith.constant 0 : index
    %c0_53 = arith.constant 0 : index
    %79 = vector.load %arg18[%c0_52, %c0_53] : memref<8x128xf32, #tpu.memory_space<vmem>>, vector<8x128xf32>
    tpu.vector_store %arg18[%c0_52, %c0_53], %78 {strides = array<i32>} : memref<8x128xf32, #tpu.memory_space<vmem>>, vector<8x128xf32>,
    return
  }
  func.func @transform_0(%arg0: i32) -> (i32, i32) {
    %c0_i32 = arith.constant 0 : i32
    %c0_i32_0 = arith.constant 0 : i32
    return %arg0, %c0_i32 : i32, i32
  }
  func.func @transform_1(%arg0: i32) -> (i32, i32) {
    %c0_i32 = arith.constant 0 : i32
    %c0_i32_0 = arith.constant 0 : i32
    %c0_i32_1 = arith.constant 0 : i32
    return %c0_i32, %c0_i32_0 : i32, i32
  }
  func.func @transform_2(%arg0: i32) -> (i32, i32) {
    %c0_i32 = arith.constant 0 : i32
    %c0_i32_0 = arith.constant 0 : i32
    %c0_i32_1 = arith.constant 0 : i32
    return %c0_i32, %c0_i32_0 : i32, i32
  }
  func.func @transform_3(%arg0: i32) -> (i32, i32) {
    %c0_i32 = arith.constant 0 : i32
    %c0_i32_0 = arith.constant 0 : i32
    %c0_i32_1 = arith.constant 0 : i32
    return %c0_i32, %c0_i32_0 : i32, i32
  }
  func.func @transform_4(%arg0: i32) -> (i32, i32) {
    %c0_i32 = arith.constant 0 : i32
    %c0_i32_0 = arith.constant 0 : i32
    %c0_i32_1 = arith.constant 0 : i32
    return %c0_i32, %c0_i32_0 : i32, i32
  }
  func.func @transform_5(%arg0: i32) -> (i32, i32) {
    %c0_i32 = arith.constant 0 : i32
    %c0_i32_0 = arith.constant 0 : i32
    %c0_i32_1 = arith.constant 0 : i32
    return %c0_i32, %c0_i32_0 : i32, i32
  }
  func.func @transform_6(%arg0: i32) -> (i32, i32) {
    %c0_i32 = arith.constant 0 : i32
    %c0_i32_0 = arith.constant 0 : i32
    %c0_i32_1 = arith.constant 0 : i32
    return %c0_i32, %c0_i32_0 : i32, i32
  }
  func.func @transform_7(%arg0: i32) -> (i32, i32) {
    %c0_i32 = arith.constant 0 : i32
    %c0_i32_0 = arith.constant 0 : i32
    %c0_i32_1 = arith.constant 0 : i32
    return %c0_i32, %c0_i32_0 : i32, i32
  }
  func.func @transform_8(%arg0: i32) -> (i32, i32) {
    %c0_i32 = arith.constant 0 : i32
    %c0_i32_0 = arith.constant 0 : i32
    %c0_i32_1 = arith.constant 0 : i32
    return %c0_i32, %c0_i32_0 : i32, i32
  }
  func.func @transform_9(%arg0: i32) -> (i32, i32) {
    %c0_i32 = arith.constant 0 : i32
    %c0_i32_0 = arith.constant 0 : i32
    %c0_i32_1 = arith.constant 0 : i32
    return %c0_i32, %c0_i32_0 : i32, i32
  }
  func.func @transform_10(%arg0: i32) -> (i32, i32) {
    %c0_i32 = arith.constant 0 : i32
    %c0_i32_0 = arith.constant 0 : i32
    %c0_i32_1 = arith.constant 0 : i32
    return %c0_i32, %c0_i32_0 : i32, i32
  }
  func.func @transform_11(%arg0: i32) -> (i32, i32) {
    %c0_i32 = arith.constant 0 : i32
    %c0_i32_0 = arith.constant 0 : i32
    %c0_i32_1 = arith.constant 0 : i32
    return %c0_i32, %c0_i32_0 : i32, i32
  }
  func.func @transform_12(%arg0: i32) -> (i32, i32) {
    %c0_i32 = arith.constant 0 : i32
    %c0_i32_0 = arith.constant 0 : i32
    %c0_i32_1 = arith.constant 0 : i32
    return %c0_i32, %c0_i32_0 : i32, i32
  }
  func.func @transform_13(%arg0: i32) -> (i32, i32) {
    %c0_i32 = arith.constant 0 : i32
    %c0_i32_0 = arith.constant 0 : i32
    %c0_i32_1 = arith.constant 0 : i32
    return %c0_i32, %c0_i32_0 : i32, i32
  }
  func.func @transform_14(%arg0: i32) -> (i32, i32) {
    %c0_i32 = arith.constant 0 : i32
    %c0_i32_0 = arith.constant 0 : i32
    %c0_i32_1 = arith.constant 0 : i32
    return %c0_i32, %c0_i32_0 : i32, i32
  }
  func.func @transform_15(%arg0: i32) -> (i32, i32) {
    %c0_i32 = arith.constant 0 : i32
    %c0_i32_0 = arith.constant 0 : i32
    %c0_i32_1 = arith.constant 0 : i32
    return %c0_i32, %c0_i32_0 : i32, i32
  }
  func.func @transform_16(%arg0: i32) -> (i32, i32) {
    %c0_i32 = arith.constant 0 : i32
    %c0_i32_0 = arith.constant 0 : i32
    %c0_i32_1 = arith.constant 0 : i32
    return %c0_i32, %c0_i32_0 : i32, i32
  }
  func.func @transform_17(%arg0: i32) -> (i32, i32) {
    %c0_i32 = arith.constant 0 : i32
    %c0_i32_0 = arith.constant 0 : i32
    return %arg0, %c0_i32 : i32, i32
  }
}

</mosaic_0001>

<llo_original>
// kernel: tpu_custom_call.1
$region0: #{tpu_custom_call.1}
  #allocation0 [shape = 'u32[]', space=smem, size = 0x4, offset = 0x4, fixed_abs, tag = 'smem constant byte address 0x4 - core index']
  #allocation1 [shape = 'u32[72,128]{1,0:T(1,128)}', space=vmem, size = 0x9000, scoped, tag = 'internal scratch']
  %s0 = inlined_call_operand.vmem [shape: bf16[8,144], index: 0, kind: input, shape index: {}]
  %s1 = inlined_call_operand.vmem [shape: bf16[144,288], index: 1, kind: input, shape index: {}]
  %s2 = inlined_call_operand.vmem [shape: f32[1,288], index: 2, kind: input, shape index: {}]
  %s3 = inlined_call_operand.vmem [shape: bf16[288,144], index: 3, kind: input, shape index: {}]
  %s4 = inlined_call_operand.vmem [shape: f32[1,144], index: 4, kind: input, shape index: {}]
  %s5 = inlined_call_operand.vmem [shape: bf16[144,36], index: 5, kind: input, shape index: {}]
  %s6 = inlined_call_operand.vmem [shape: f32[1,36], index: 6, kind: input, shape index: {}]
  %s7 = inlined_call_operand.vmem [shape: bf16[36,9], index: 7, kind: input, shape index: {}]
  %s8 = inlined_call_operand.vmem [shape: f32[1,9], index: 8, kind: input, shape index: {}]
  %s9 = inlined_call_operand.vmem [shape: bf16[9,64], index: 9, kind: input, shape index: {}]
  %s10 = inlined_call_operand.vmem [shape: f32[1,64], index: 10, kind: input, shape index: {}]
  %s11 = inlined_call_operand.vmem [shape: bf16[64,32], index: 11, kind: input, shape index: {}]
  %s12 = inlined_call_operand.vmem [shape: f32[1,32], index: 12, kind: input, shape index: {}]
  %s13 = inlined_call_operand.vmem [shape: bf16[32,16], index: 13, kind: input, shape index: {}]
  %s14 = inlined_call_operand.vmem [shape: f32[1,16], index: 14, kind: input, shape index: {}]
  %s15 = inlined_call_operand.vmem [shape: bf16[16,128], index: 15, kind: input, shape index: {}]
  %s16 = inlined_call_operand.vmem [shape: f32[1,128], index: 16, kind: input, shape index: {}]
  %s17 = inlined_call_operand.hbm [shape: f32[8,128], index: 17, kind: output, shape index: {}]
  %s18 = sld [smem:[#allocation0]]
  $region78: #{tpu_custom_call.1} parent=0
    _
  %s20 = ssub.s32 1, %s18
  %s21 = scalar_select 0, %s20, %s18
  $region1: #{tpu_custom_call.1} parent=0
    #allocation2 [shape = 'u8[4096]{0}', space=vmem, size = 0x1000, scoped, tag = 'output window, operand 0, single buffered']
    #allocation3 [shape = 's32[1]{0}', space=sflag, size = 0x4, scoped, tag = 'scoped memory for tpu_custom_call.1']
    %22 = vsyncpa [#allocation3], 0
    // Predicated region
    $region2: #{tpu_custom_call.1} parent=1 // pred_check
      _
    $region3: #{tpu_custom_call.1} parent=1 // pred_check_branch
      %24 = sbr.rel (0) target = $region5
    $region4: #{tpu_custom_call.1} parent=1 // pred_region
      _
    $region5: #{tpu_custom_call.1} parent=1 // pred_fallthru
      _
    // Predicated region
    $region6: #{tpu_custom_call.1} parent=1 // pred_check
      _
    $region7: #{tpu_custom_call.1} parent=1 // pred_check_branch
      %26 = sbr.rel (0) target = $region9
    $region8: #{tpu_custom_call.1} parent=1 // pred_region
      _
    $region9: #{tpu_custom_call.1} parent=1 // pred_fallthru
      _
    // Predicated region
    $region10: #{tpu_custom_call.1} parent=1 // pred_check
      _
    $region11: #{tpu_custom_call.1} parent=1 // pred_check_branch
      %28 = sbr.rel (0) target = $region13
    $region12: #{tpu_custom_call.1} parent=1 // pred_region
      _
    $region13: #{tpu_custom_call.1} parent=1 // pred_fallthru
      _
    // Predicated region
    $region14: #{tpu_custom_call.1} parent=1 // pred_check
      _
    $region15: #{tpu_custom_call.1} parent=1 // pred_check_branch
      %30 = sbr.rel (0) target = $region17
    $region16: #{tpu_custom_call.1} parent=1 // pred_region
      _
    $region17: #{tpu_custom_call.1} parent=1 // pred_fallthru
      _
    // Predicated region
    $region18: #{tpu_custom_call.1} parent=1 // pred_check
      _
    $region19: #{tpu_custom_call.1} parent=1 // pred_check_branch
      %32 = sbr.rel (0) target = $region21
    $region20: #{tpu_custom_call.1} parent=1 // pred_region
      _
    $region21: #{tpu_custom_call.1} parent=1 // pred_fallthru
      _
    // Predicated region
    $region22: #{tpu_custom_call.1} parent=1 // pred_check
      _
    $region23: #{tpu_custom_call.1} parent=1 // pred_check_branch
      %34 = sbr.rel (0) target = $region25
    $region24: #{tpu_custom_call.1} parent=1 // pred_region
      _
    $region25: #{tpu_custom_call.1} parent=1 // pred_fallthru
      _
    // Predicated region
    $region26: #{tpu_custom_call.1} parent=1 // pred_check
      _
    $region27: #{tpu_custom_call.1} parent=1 // pred_check_branch
      %36 = sbr.rel (0) target = $region29
    $region28: #{tpu_custom_call.1} parent=1 // pred_region
      _
    $region29: #{tpu_custom_call.1} parent=1 // pred_fallthru
      _
    // Predicated region
    $region30: #{tpu_custom_call.1} parent=1 // pred_check
      _
    $region31: #{tpu_custom_call.1} parent=1 // pred_check_branch
      %38 = sbr.rel (0) target = $region33
    $region32: #{tpu_custom_call.1} parent=1 // pred_region
      _
    $region33: #{tpu_custom_call.1} parent=1 // pred_fallthru
      _
    // Predicated region
    $region34: #{tpu_custom_call.1} parent=1 // pred_check
      _
    $region35: #{tpu_custom_call.1} parent=1 // pred_check_branch
      %40 = sbr.rel (0) target = $region37
    $region36: #{tpu_custom_call.1} parent=1 // pred_region
      _
    $region37: #{tpu_custom_call.1} parent=1 // pred_fallthru
      _
    // Predicated region
    $region38: #{tpu_custom_call.1} parent=1 // pred_check
      _
    $region39: #{tpu_custom_call.1} parent=1 // pred_check_branch
      %42 = sbr.rel (0) target = $region41
    $region40: #{tpu_custom_call.1} parent=1 // pred_region
      _
    $region41: #{tpu_custom_call.1} parent=1 // pred_fallthru
      _
    // Predicated region
    $region42: #{tpu_custom_call.1} parent=1 // pred_check
      _
    $region43: #{tpu_custom_call.1} parent=1 // pred_check_branch
      %44 = sbr.rel (0) target = $region45
    $region44: #{tpu_custom_call.1} parent=1 // pred_region
      _
    $region45: #{tpu_custom_call.1} parent=1 // pred_fallthru
      _
    // Predicated region
    $region46: #{tpu_custom_call.1} parent=1 // pred_check
      _
    $region47: #{tpu_custom_call.1} parent=1 // pred_check_branch
      %46 = sbr.rel (0) target = $region49
    $region48: #{tpu_custom_call.1} parent=1 // pred_region
      _
    $region49: #{tpu_custom_call.1} parent=1 // pred_fallthru
      _
    // Predicated region
    $region50: #{tpu_custom_call.1} parent=1 // pred_check
      _
    $region51: #{tpu_custom_call.1} parent=1 // pred_check_branch
      %48 = sbr.rel (0) target = $region53
    $region52: #{tpu_custom_call.1} parent=1 // pred_region
      _
    $region53: #{tpu_custom_call.1} parent=1 // pred_fallthru
      _
    // Predicated region
    $region54: #{tpu_custom_call.1} parent=1 // pred_check
      _
    $region55: #{tpu_custom_call.1} parent=1 // pred_check_branch
      %50 = sbr.rel (0) target = $region57
    $region56: #{tpu_custom_call.1} parent=1 // pred_region
      _
    $region57: #{tpu_custom_call.1} parent=1 // pred_fallthru
      _
    // Predicated region
    $region58: #{tpu_custom_call.1} parent=1 // pred_check
      _
    $region59: #{tpu_custom_call.1} parent=1 // pred_check_branch
      %52 = sbr.rel (0) target = $region61
    $region60: #{tpu_custom_call.1} parent=1 // pred_region
      _
    $region61: #{tpu_custom_call.1} parent=1 // pred_fallthru
      _
    // Predicated region
    $region62: #{tpu_custom_call.1} parent=1 // pred_check
      _
    $region63: #{tpu_custom_call.1} parent=1 // pred_check_branch
      %54 = sbr.rel (0) target = $region65
    $region64: #{tpu_custom_call.1} parent=1 // pred_region
      _
    $region65: #{tpu_custom_call.1} parent=1 // pred_fallthru
      _
    // Predicated region
    $region66: #{tpu_custom_call.1} parent=1 // pred_check
      _
    $region67: #{tpu_custom_call.1} parent=1 // pred_check_branch
      %56 = sbr.rel (0) target = $region69
    $region68: #{tpu_custom_call.1} parent=1 // pred_region
      _
    $region69: #{tpu_custom_call.1} parent=1 // pred_fallthru
      _
    %v58 = vld [vmem:[%s0] sm:$0xff]
    %v59 = vld [vmem:[%s1] sm:$0xff]
    %v60 = vld [vmem:[%s1 + $0x8] sm:$0xf]
    %v61 = vld [vmem:[%s1 + $0xc] sm:$0xff]
    %v62 = vld [vmem:[%s1 + $0x14] sm:$0xf]
    %v63 = vld [vmem:[%s1 + $0x18] sm:$0xff]
    %v64 = vld [vmem:[%s1 + $0x20] sm:$0xf]
    %v65 = vld [vmem:[%s1 + $0x24] sm:$0xff]
    %v66 = vld [vmem:[%s1 + $0x2c] sm:$0xf]
    %v67 = vld [vmem:[%s1 + $0x30] sm:$0xff]
    %v68 = vld [vmem:[%s1 + $0x38] sm:$0xf]
    %v69 = vld [vmem:[%s1 + $0x3c] sm:$0xff]
    %v70 = vld [vmem:[%s1 + $0x44] sm:$0xf]
    %v71 = vld [vmem:[%s1 + $0x48] sm:$0xff]
    %v72 = vld [vmem:[%s1 + $0x50] sm:$0xf]
    %v73 = vld [vmem:[%s1 + $0x54] sm:$0xff]
    %v74 = vld [vmem:[%s1 + $0x5c] sm:$0xf]
    %v75 = vld [vmem:[%s1 + $0x60] sm:$0xff]
    %v76 = vld [vmem:[%s1 + $0x68] sm:$0xf]
    %v77 = vld [vmem:[%s1 + $0x6c] sm:$0xff]
    %v78 = vld [vmem:[%s1 + $0x74] sm:$0xf]
    %v79 = vld [vmem:[%s1 + $0x78] sm:$0xff]
    %v80 = vld [vmem:[%s1 + $0x80] sm:$0xf]
    %v81 = vld [vmem:[%s1 + $0x84] sm:$0xff]
    %v82 = vld [vmem:[%s1 + $0x8c] sm:$0xf]
    %v83 = vld [vmem:[%s1 + $0x90] sm:$0xff]
    %v84 = vld [vmem:[%s1 + $0x98] sm:$0xf]
    %v85 = vld [vmem:[%s1 + $0x9c] sm:$0xff]
    %v86 = vld [vmem:[%s1 + $0xa4] sm:$0xf]
    %v87 = vld [vmem:[%s1 + $0xa8] sm:$0xff]
    %v88 = vld [vmem:[%s1 + $0xb0] sm:$0xf]
    %v89 = vld [vmem:[%s1 + $0xb4] sm:$0xff]
    %v90 = vld [vmem:[%s1 + $0xbc] sm:$0xf]
    %v91 = vld [vmem:[%s1 + $0xc0] sm:$0xff]
    %v92 = vld [vmem:[%s1 + $0xc8] sm:$0xf]
    %v93 = vld [vmem:[%s1 + $0xcc] sm:$0xff]
    %v94 = vld [vmem:[%s1 + $0xd4] sm:$0xf]
    %v95 = vld [vmem:[%s2] sm:$0x7]
    %v97 = vperm.slane %v95, 0
    %v98 = vperm.slane %v95, 1
    %v99 = vperm.slane %v95, 2
    %v104 = vunpack.c.l.b16 %v58
    %v105 = vunpack.c.h.b16 %v58
    %v106 = vpack.c.b16 %v104, %v104
    %v107 = vpack.c.b16 %v105, %v105
    %v145 = vunpack.c.l.b16 %v59
    %v146 = vunpack.c.h.b16 %v59
    %v147 = vunpack.c.l.b16 %v60
    %v148 = vunpack.c.l.b16 %v61
    %v149 = vunpack.c.h.b16 %v61
    %v150 = vunpack.c.l.b16 %v62
    %v151 = vunpack.c.l.b16 %v63
    %v152 = vunpack.c.h.b16 %v63
    %v153 = vunpack.c.l.b16 %v64
    %v154 = vunpack.c.l.b16 %v65
    %v155 = vunpack.c.h.b16 %v65
    %v156 = vunpack.c.l.b16 %v66
    %v157 = vunpack.c.l.b16 %v67
    %v158 = vunpack.c.h.b16 %v67
    %v159 = vunpack.c.l.b16 %v68
    %v160 = vunpack.c.l.b16 %v69
    %v161 = vunpack.c.h.b16 %v69
    %v162 = vunpack.c.l.b16 %v70
    %v163 = vunpack.c.l.b16 %v71
    %v164 = vunpack.c.h.b16 %v71
    %v165 = vunpack.c.l.b16 %v72
    %v166 = vunpack.c.l.b16 %v73
    %v167 = vunpack.c.h.b16 %v73
    %v168 = vunpack.c.l.b16 %v74
    %v169 = vunpack.c.l.b16 %v75
    %v170 = vunpack.c.h.b16 %v75
    %v171 = vunpack.c.l.b16 %v76
    %v172 = vunpack.c.l.b16 %v77
    %v173 = vunpack.c.h.b16 %v77
    %v174 = vunpack.c.l.b16 %v78
    %v175 = vunpack.c.l.b16 %v79
    %v176 = vunpack.c.h.b16 %v79
    %v177 = vunpack.c.l.b16 %v80
    %v178 = vunpack.c.l.b16 %v81
    %v179 = vunpack.c.h.b16 %v81
    %v180 = vunpack.c.l.b16 %v82
    %v181 = vunpack.c.l.b16 %v83
    %v182 = vunpack.c.h.b16 %v83
    %v183 = vunpack.c.l.b16 %v84
    %v184 = vunpack.c.l.b16 %v85
    %v185 = vunpack.c.h.b16 %v85
    %v186 = vunpack.c.l.b16 %v86
    %v187 = vunpack.c.l.b16 %v87
    %v188 = vunpack.c.h.b16 %v87
    %v189 = vunpack.c.l.b16 %v88
    %v190 = vunpack.c.l.b16 %v89
    %v191 = vunpack.c.h.b16 %v89
    %v192 = vunpack.c.l.b16 %v90
    %v193 = vunpack.c.l.b16 %v91
    %v194 = vunpack.c.h.b16 %v91
    %v195 = vunpack.c.l.b16 %v92
    %v196 = vunpack.c.l.b16 %v93
    %v197 = vunpack.c.h.b16 %v93
    %v198 = vunpack.c.l.b16 %v94
    %v199 = vpack.c.b16 %v148, %v145
    %v200 = vpack.c.b16 %v149, %v146
    %v201 = vpack.c.b16 %v150, %v147
    %v202 = vpack.c.b16 %v154, %v151
    %v203 = vpack.c.b16 %v155, %v152
    %v204 = vpack.c.b16 %v156, %v153
    %v205 = vpack.c.b16 %v160, %v157
    %v206 = vpack.c.b16 %v161, %v158
    %v207 = vpack.c.b16 %v162, %v159
    %v208 = vpack.c.b16 %v166, %v163
    %v209 = vpack.c.b16 %v167, %v164
    %v210 = vpack.c.b16 %v168, %v165
    %v211 = vpack.c.b16 %v172, %v169
    %v212 = vpack.c.b16 %v173, %v170
    %v213 = vpack.c.b16 %v174, %v171
    %v214 = vpack.c.b16 %v178, %v175
    %v215 = vpack.c.b16 %v179, %v176
    %v216 = vpack.c.b16 %v180, %v177
    %v217 = vpack.c.b16 %v184, %v181
    %v218 = vpack.c.b16 %v185, %v182
    %v219 = vpack.c.b16 %v186, %v183
    %v220 = vpack.c.b16 %v190, %v187
    %v221 = vpack.c.b16 %v191, %v188
    %v222 = vpack.c.b16 %v192, %v189
    %v223 = vpack.c.b16 %v196, %v193
    %v224 = vpack.c.b16 %v197, %v194
    %v225 = vpack.c.b16 %v198, %v195
    %vm253 = vcmask 130048
    %v255 = vsel %vm253, %v107, 0
    %257 = vmatpush.bf16.msra.mxu0 %v220
    %258 = vmatpush.bf16.msra.mxu0 %v217
    %259 = vmatpush.bf16.msra.mxu0 %v214
    %260 = vmatpush.bf16.msra.mxu0 %v211
    %261 = vmatpush.bf16.msra.mxu0 %v208
    %262 = vmatpush.bf16.msra.mxu0 %v205
    %263 = vmatpush.bf16.msra.mxu0 %v202
    %264 = vmatpush.bf16.msra.mxu0 %v199
    %265 = vmatmul.bf16.gmra.mxu0 %v106
    %v266 = vpop.f32.mrf.mxu0
    %v267 = vadd.f32 %v97, %v266
    %v268 = vpop.f32.mrf.mxu0
    %269 = vdwg.mxu0
    %270 = vmatpush.bf16.msra.mxu0 0
    %271 = vmatpush.bf16.msra.mxu0 0
    %272 = vmatpush.bf16.msra.mxu0 0
    %273 = vmatpush.bf16.msra.mxu0 0
    %274 = vmatpush.bf16.msra.mxu0 0
    %275 = vmatpush.bf16.msra.mxu0 0
    %276 = vmatpush.bf16.msra.mxu0 0
    %277 = vmatpush.bf16.msra.mxu0 %v223
    %278 = vmatmul.bf16.gmra.mxu0 %v255
    %v279 = vpop.f32.mrf.mxu0
    %v280 = vadd.f32 %v267, %v279
    %v281 = vpop.f32.mrf.mxu0
    %282 = vdwg.mxu0
    %283 = vmatpush.bf16.msra.mxu0 %v221
    %284 = vmatpush.bf16.msra.mxu0 %v218
    %285 = vmatpush.bf16.msra.mxu0 %v215
    %286 = vmatpush.bf16.msra.mxu0 %v212
    %287 = vmatpush.bf16.msra.mxu0 %v209
    %288 = vmatpush.bf16.msra.mxu0 %v206
    %289 = vmatpush.bf16.msra.mxu0 %v203
    %290 = vmatpush.bf16.msra.mxu0 %v200
    %291 = vmatmul.bf16.gmra.mxu0 %v106
    %v292 = vpop.f32.mrf.mxu0
    %v293 = vadd.f32 %v98, %v292
    %v294 = vpop.f32.mrf.mxu0
    %295 = vdwg.mxu0
    %296 = vmatpush.bf16.msra.mxu0 0
    %297 = vmatpush.bf16.msra.mxu0 0
    %298 = vmatpush.bf16.msra.mxu0 0
    %299 = vmatpush.bf16.msra.mxu0 0
    %300 = vmatpush.bf16.msra.mxu0 0
    %301 = vmatpush.bf16.msra.mxu0 0
    %302 = vmatpush.bf16.msra.mxu0 0
    %303 = vmatpush.bf16.msra.mxu0 %v224
    %304 = vmatmul.bf16.gmra.mxu0 %v255
    %v305 = vpop.f32.mrf.mxu0
    %v306 = vadd.f32 %v293, %v305
    %v307 = vpop.f32.mrf.mxu0
    %308 = vdwg.mxu0
    %309 = vmatpush.bf16.msra.mxu0 %v222
    %310 = vmatpush.bf16.msra.mxu0 %v219
    %311 = vmatpush.bf16.msra.mxu0 %v216
    %312 = vmatpush.bf16.msra.mxu0 %v213
    %313 = vmatpush.bf16.msra.mxu0 %v210
    %314 = vmatpush.bf16.msra.mxu0 %v207
    %315 = vmatpush.bf16.msra.mxu0 %v204
    %316 = vmatpush.bf16.msra.mxu0 %v201
    %317 = vmatmul.bf16.gmra.mxu0 %v106
    %v318 = vpop.f32.mrf.mxu0
    %v319 = vadd.f32 %v99, %v318
    %v320 = vpop.f32.mrf.mxu0
    %321 = vdwg.mxu0
    %322 = vmatpush.bf16.msra.mxu0 0
    %323 = vmatpush.bf16.msra.mxu0 0
    %324 = vmatpush.bf16.msra.mxu0 0
    %325 = vmatpush.bf16.msra.mxu0 0
    %326 = vmatpush.bf16.msra.mxu0 0
    %327 = vmatpush.bf16.msra.mxu0 0
    %328 = vmatpush.bf16.msra.mxu0 0
    %329 = vmatpush.bf16.msra.mxu0 %v225
    %330 = vmatmul.bf16.gmra.mxu0 %v255
    %v331 = vpop.f32.mrf.mxu0
    %v332 = vadd.f32 %v319, %v331
    %v333 = vpop.f32.mrf.mxu0
    %334 = vdwg.mxu0
    %vm335 = vcmp.ge.f32.partialorder %v280, 0.0
    %vm336 = vcmp.ge.f32.partialorder %v306, 0.0
    %vm337 = vcmp.ge.f32.partialorder %v332, 0.0
    %v338 = vmul.f32 %v280, 0.01
    %v339 = vmul.f32 %v306, 0.01
    %v340 = vmul.f32 %v332, 0.01
    %v341 = vsel %vm335, %v280, %v338
    %v342 = vsel %vm336, %v306, %v339
    %v343 = vsel %vm337, %v332, %v340
    %v344 = vpack.c.bf16 %v341, %v341
    %v345 = vpack.c.bf16 %v342, %v342
    %v346 = vpack.c.bf16 %v343, %v343
    %v347 = vld [vmem:[%s3] sm:$0xff]
    %v348 = vld [vmem:[%s3 + $0x8] sm:$0xff]
    %v349 = vld [vmem:[%s3 + $0x10] sm:$0xff]
    %v350 = vld [vmem:[%s3 + $0x18] sm:$0xff]
    %v351 = vld [vmem:[%s3 + $0x20] sm:$0xff]
    %v352 = vld [vmem:[%s3 + $0x28] sm:$0xff]
    %v353 = vld [vmem:[%s3 + $0x30] sm:$0xff]
    %v354 = vld [vmem:[%s3 + $0x38] sm:$0xff]
    %v355 = vld [vmem:[%s3 + $0x40] sm:$0xff]
    %v356 = vld [vmem:[%s3 + $0x48] sm:$0xff]
    %v357 = vld [vmem:[%s3 + $0x50] sm:$0xff]
    %v358 = vld [vmem:[%s3 + $0x58] sm:$0xff]
    %v359 = vld [vmem:[%s3 + $0x60] sm:$0xff]
    %v360 = vld [vmem:[%s3 + $0x68] sm:$0xff]
    %v361 = vld [vmem:[%s3 + $0x70] sm:$0xff]
    %v362 = vld [vmem:[%s3 + $0x78] sm:$0xff]
    %v363 = vld [vmem:[%s3 + $0x80] sm:$0xff]
    %v364 = vld [vmem:[%s3 + $0x88] sm:$0xff]
    %v365 = vld [vmem:[%s3 + $0x90] sm:$0xff]
    %v366 = vld [vmem:[%s3 + $0x98] sm:$0xff]
    %v367 = vld [vmem:[%s3 + $0xa0] sm:$0xff]
    %v368 = vld [vmem:[%s3 + $0xa8] sm:$0xff]
    %v369 = vld [vmem:[%s3 + $0xb0] sm:$0xff]
    %v370 = vld [vmem:[%s3 + $0xb8] sm:$0xff]
    %v371 = vld [vmem:[%s3 + $0xc0] sm:$0xff]
    %v372 = vld [vmem:[%s3 + $0xc8] sm:$0xff]
    %v373 = vld [vmem:[%s3 + $0xd0] sm:$0xff]
    %v374 = vld [vmem:[%s3 + $0xd8] sm:$0xff]
    %v375 = vld [vmem:[%s3 + $0xe0] sm:$0xff]
    %v376 = vld [vmem:[%s3 + $0xe8] sm:$0xff]
    %v377 = vld [vmem:[%s3 + $0xf0] sm:$0xff]
    %v378 = vld [vmem:[%s3 + $0xf8] sm:$0xff]
    %v379 = vld [vmem:[%s3 + $0x100] sm:$0xff]
    %v380 = vld [vmem:[%s3 + $0x108] sm:$0xff]
    %v381 = vld [vmem:[%s3 + $0x110] sm:$0xff]
    %v382 = vld [vmem:[%s3 + $0x118] sm:$0xff]
    %v383 = vld [vmem:[%s4] sm:$0x3]
    %v385 = vperm.slane %v383, 0
    %v386 = vperm.slane %v383, 1
    %v425 = vunpack.c.l.b16 %v347
    %v426 = vunpack.c.h.b16 %v347
    %v427 = vunpack.c.l.b16 %v348
    %v428 = vunpack.c.h.b16 %v348
    %v429 = vunpack.c.l.b16 %v349
    %v430 = vunpack.c.h.b16 %v349
    %v431 = vunpack.c.l.b16 %v350
    %v432 = vunpack.c.h.b16 %v350
    %v433 = vunpack.c.l.b16 %v351
    %v434 = vunpack.c.h.b16 %v351
    %v435 = vunpack.c.l.b16 %v352
    %v436 = vunpack.c.h.b16 %v352
    %v437 = vunpack.c.l.b16 %v353
    %v438 = vunpack.c.h.b16 %v353
    %v439 = vunpack.c.l.b16 %v354
    %v440 = vunpack.c.h.b16 %v354
    %v441 = vunpack.c.l.b16 %v355
    %v442 = vunpack.c.h.b16 %v355
    %v443 = vunpack.c.l.b16 %v356
    %v444 = vunpack.c.h.b16 %v356
    %v445 = vunpack.c.l.b16 %v357
    %v446 = vunpack.c.h.b16 %v357
    %v447 = vunpack.c.l.b16 %v358
    %v448 = vunpack.c.h.b16 %v358
    %v449 = vunpack.c.l.b16 %v359
    %v450 = vunpack.c.h.b16 %v359
    %v451 = vunpack.c.l.b16 %v360
    %v452 = vunpack.c.h.b16 %v360
    %v453 = vunpack.c.l.b16 %v361
    %v454 = vunpack.c.h.b16 %v361
    %v455 = vunpack.c.l.b16 %v362
    %v456 = vunpack.c.h.b16 %v362
    %v457 = vunpack.c.l.b16 %v363
    %v458 = vunpack.c.h.b16 %v363
    %v459 = vunpack.c.l.b16 %v364
    %v460 = vunpack.c.h.b16 %v364
    %v461 = vunpack.c.l.b16 %v365
    %v462 = vunpack.c.h.b16 %v365
    %v463 = vunpack.c.l.b16 %v366
    %v464 = vunpack.c.h.b16 %v366
    %v465 = vunpack.c.l.b16 %v367
    %v466 = vunpack.c.h.b16 %v367
    %v467 = vunpack.c.l.b16 %v368
    %v468 = vunpack.c.h.b16 %v368
    %v469 = vunpack.c.l.b16 %v369
    %v470 = vunpack.c.h.b16 %v369
    %v471 = vunpack.c.l.b16 %v370
    %v472 = vunpack.c.h.b16 %v370
    %v473 = vunpack.c.l.b16 %v371
    %v474 = vunpack.c.h.b16 %v371
    %v475 = vunpack.c.l.b16 %v372
    %v476 = vunpack.c.h.b16 %v372
    %v477 = vunpack.c.l.b16 %v373
    %v478 = vunpack.c.h.b16 %v373
    %v479 = vunpack.c.l.b16 %v374
    %v480 = vunpack.c.h.b16 %v374
    %v481 = vunpack.c.l.b16 %v375
    %v482 = vunpack.c.h.b16 %v375
    %v483 = vunpack.c.l.b16 %v376
    %v484 = vunpack.c.h.b16 %v376
    %v485 = vunpack.c.l.b16 %v377
    %v486 = vunpack.c.h.b16 %v377
    %v487 = vunpack.c.l.b16 %v378
    %v488 = vunpack.c.h.b16 %v378
    %v489 = vunpack.c.l.b16 %v379
    %v490 = vunpack.c.h.b16 %v379
    %v491 = vunpack.c.l.b16 %v380
    %v492 = vunpack.c.h.b16 %v380
    %v493 = vunpack.c.l.b16 %v381
    %v494 = vunpack.c.h.b16 %v381
    %v495 = vunpack.c.l.b16 %v382
    %v496 = vunpack.c.h.b16 %v382
    %v497 = vpack.c.b16 %v427, %v425
    %v498 = vpack.c.b16 %v428, %v426
    %v499 = vpack.c.b16 %v431, %v429
    %v500 = vpack.c.b16 %v432, %v430
    %v501 = vpack.c.b16 %v435, %v433
    %v502 = vpack.c.b16 %v436, %v434
    %v503 = vpack.c.b16 %v439, %v437
    %v504 = vpack.c.b16 %v440, %v438
    %v505 = vpack.c.b16 %v443, %v441
    %v506 = vpack.c.b16 %v444, %v442
    %v507 = vpack.c.b16 %v447, %v445
    %v508 = vpack.c.b16 %v448, %v446
    %v509 = vpack.c.b16 %v451, %v449
    %v510 = vpack.c.b16 %v452, %v450
    %v511 = vpack.c.b16 %v455, %v453
    %v512 = vpack.c.b16 %v456, %v454
    %v513 = vpack.c.b16 %v459, %v457
    %v514 = vpack.c.b16 %v460, %v458
    %v515 = vpack.c.b16 %v463, %v461
    %v516 = vpack.c.b16 %v464, %v462
    %v517 = vpack.c.b16 %v467, %v465
    %v518 = vpack.c.b16 %v468, %v466
    %v519 = vpack.c.b16 %v471, %v469
    %v520 = vpack.c.b16 %v472, %v470
    %v521 = vpack.c.b16 %v475, %v473
    %v522 = vpack.c.b16 %v476, %v474
    %v523 = vpack.c.b16 %v479, %v477
    %v524 = vpack.c.b16 %v480, %v478
    %v525 = vpack.c.b16 %v483, %v481
    %v526 = vpack.c.b16 %v484, %v482
    %v527 = vpack.c.b16 %v487, %v485
    %v528 = vpack.c.b16 %v488, %v486
    %v529 = vpack.c.b16 %v491, %v489
    %v530 = vpack.c.b16 %v492, %v490
    %v531 = vpack.c.b16 %v495, %v493
    %v532 = vpack.c.b16 %v496, %v494
    %vm569 = vcmask 261120
    %v571 = vsel %vm569, %v346, 0
    %573 = vmatpush.bf16.msra.mxu0 %v511
    %574 = vmatpush.bf16.msra.mxu0 %v509
    %575 = vmatpush.bf16.msra.mxu0 %v507
    %576 = vmatpush.bf16.msra.mxu0 %v505
    %577 = vmatpush.bf16.msra.mxu0 %v503
    %578 = vmatpush.bf16.msra.mxu0 %v501
    %579 = vmatpush.bf16.msra.mxu0 %v499
    %580 = vmatpush.bf16.msra.mxu0 %v497
    %581 = vmatmul.bf16.gmra.mxu0 %v344
    %v582 = vpop.f32.mrf.mxu0
    %v583 = vadd.f32 %v385, %v582
    %v584 = vpop.f32.mrf.mxu0
    %585 = vdwg.mxu0
    %586 = vmatpush.bf16.msra.mxu0 %v527
    %587 = vmatpush.bf16.msra.mxu0 %v525
    %588 = vmatpush.bf16.msra.mxu0 %v523
    %589 = vmatpush.bf16.msra.mxu0 %v521
    %590 = vmatpush.bf16.msra.mxu0 %v519
    %591 = vmatpush.bf16.msra.mxu0 %v517
    %592 = vmatpush.bf16.msra.mxu0 %v515
    %593 = vmatpush.bf16.msra.mxu0 %v513
    %594 = vmatmul.bf16.gmra.mxu0 %v345
    %v595 = vpop.f32.mrf.mxu0
    %v596 = vadd.f32 %v583, %v595
    %v597 = vpop.f32.mrf.mxu0
    %598 = vdwg.mxu0
    %599 = vmatpush.bf16.msra.mxu0 0
    %600 = vmatpush.bf16.msra.mxu0 0
    %601 = vmatpush.bf16.msra.mxu0 0
    %602 = vmatpush.bf16.msra.mxu0 0
    %603 = vmatpush.bf16.msra.mxu0 0
    %604 = vmatpush.bf16.msra.mxu0 0
    %605 = vmatpush.bf16.msra.mxu0 %v531
    %606 = vmatpush.bf16.msra.mxu0 %v529
    %607 = vmatmul.bf16.gmra.mxu0 %v571
    %v608 = vpop.f32.mrf.mxu0
    %v609 = vadd.f32 %v596, %v608
    %v610 = vpop.f32.mrf.mxu0
    %611 = vdwg.mxu0
    %612 = vmatpush.bf16.msra.mxu0 %v512
    %613 = vmatpush.bf16.msra.mxu0 %v510
    %614 = vmatpush.bf16.msra.mxu0 %v508
    %615 = vmatpush.bf16.msra.mxu0 %v506
    %616 = vmatpush.bf16.msra.mxu0 %v504
    %617 = vmatpush.bf16.msra.mxu0 %v502
    %618 = vmatpush.bf16.msra.mxu0 %v500
    %619 = vmatpush.bf16.msra.mxu0 %v498
    %620 = vmatmul.bf16.gmra.mxu0 %v344
    %v621 = vpop.f32.mrf.mxu0
    %v622 = vadd.f32 %v386, %v621
    %v623 = vpop.f32.mrf.mxu0
    %624 = vdwg.mxu0
    %625 = vmatpush.bf16.msra.mxu0 %v528
    %626 = vmatpush.bf16.msra.mxu0 %v526
    %627 = vmatpush.bf16.msra.mxu0 %v524
    %628 = vmatpush.bf16.msra.mxu0 %v522
    %629 = vmatpush.bf16.msra.mxu0 %v520
    %630 = vmatpush.bf16.msra.mxu0 %v518
    %631 = vmatpush.bf16.msra.mxu0 %v516
    %632 = vmatpush.bf16.msra.mxu0 %v514
    %633 = vmatmul.bf16.gmra.mxu0 %v345
    %v634 = vpop.f32.mrf.mxu0
    %v635 = vadd.f32 %v622, %v634
    %v636 = vpop.f32.mrf.mxu0
    %637 = vdwg.mxu0
    %638 = vmatpush.bf16.msra.mxu0 0
    %639 = vmatpush.bf16.msra.mxu0 0
    %640 = vmatpush.bf16.msra.mxu0 0
    %641 = vmatpush.bf16.msra.mxu0 0
    %642 = vmatpush.bf16.msra.mxu0 0
    %643 = vmatpush.bf16.msra.mxu0 0
    %644 = vmatpush.bf16.msra.mxu0 %v532
    %645 = vmatpush.bf16.msra.mxu0 %v530
    %646 = vmatmul.bf16.gmra.mxu0 %v571
    %v647 = vpop.f32.mrf.mxu0
    %v648 = vadd.f32 %v635, %v647
    %v649 = vpop.f32.mrf.mxu0
    %650 = vdwg.mxu0
    %vm651 = vcmp.ge.f32.partialorder %v609, 0.0
    %vm652 = vcmp.ge.f32.partialorder %v648, 0.0
    %v653 = vmul.f32 %v609, 0.01
    %v654 = vmul.f32 %v648, 0.01
    %v655 = vsel %vm651, %v609, %v653
    %v656 = vsel %vm652, %v648, %v654
    %v657 = vpack.c.bf16 %v655, %v655
    %v658 = vpack.c.bf16 %v656, %v656
    %v659 = vld [vmem:[%s5] sm:$0xf]
    %v660 = vld [vmem:[%s5 + $0x4] sm:$0xf]
    %v661 = vld [vmem:[%s5 + $0x8] sm:$0xf]
    %v662 = vld [vmem:[%s5 + $0xc] sm:$0xf]
    %v663 = vld [vmem:[%s5 + $0x10] sm:$0xf]
    %v664 = vld [vmem:[%s5 + $0x14] sm:$0xf]
    %v665 = vld [vmem:[%s5 + $0x18] sm:$0xf]
    %v666 = vld [vmem:[%s5 + $0x1c] sm:$0xf]
    %v667 = vld [vmem:[%s5 + $0x20] sm:$0xf]
    %v668 = vld [vmem:[%s5 + $0x24] sm:$0xf]
    %v669 = vld [vmem:[%s5 + $0x28] sm:$0xf]
    %v670 = vld [vmem:[%s5 + $0x2c] sm:$0xf]
    %v671 = vld [vmem:[%s5 + $0x30] sm:$0xf]
    %v672 = vld [vmem:[%s5 + $0x34] sm:$0xf]
    %v673 = vld [vmem:[%s5 + $0x38] sm:$0xf]
    %v674 = vld [vmem:[%s5 + $0x3c] sm:$0xf]
    %v675 = vld [vmem:[%s5 + $0x40] sm:$0xf]
    %v676 = vld [vmem:[%s5 + $0x44] sm:$0xf]
    %v677 = vld [vmem:[%s6] sm:$0x1]
    %v679 = vperm.slane %v677, 0
    %v699 = vunpack.c.l.b16 %v659
    %v700 = vunpack.c.l.b16 %v660
    %v701 = vunpack.c.l.b16 %v661
    %v702 = vunpack.c.l.b16 %v662
    %v703 = vunpack.c.l.b16 %v663
    %v704 = vunpack.c.l.b16 %v664
    %v705 = vunpack.c.l.b16 %v665
    %v706 = vunpack.c.l.b16 %v666
    %v707 = vunpack.c.l.b16 %v667
    %v708 = vunpack.c.l.b16 %v668
    %v709 = vunpack.c.l.b16 %v669
    %v710 = vunpack.c.l.b16 %v670
    %v711 = vunpack.c.l.b16 %v671
    %v712 = vunpack.c.l.b16 %v672
    %v713 = vunpack.c.l.b16 %v673
    %v714 = vunpack.c.l.b16 %v674
    %v715 = vunpack.c.l.b16 %v675
    %v716 = vunpack.c.l.b16 %v676
    %v717 = vpack.c.b16 %v700, %v699
    %v718 = vpack.c.b16 %v702, %v701
    %v719 = vpack.c.b16 %v704, %v703
    %v720 = vpack.c.b16 %v706, %v705
    %v721 = vpack.c.b16 %v708, %v707
    %v722 = vpack.c.b16 %v710, %v709
    %v723 = vpack.c.b16 %v712, %v711
    %v724 = vpack.c.b16 %v714, %v713
    %v725 = vpack.c.b16 %v716, %v715
    %v736 = vsel %vm253, %v658, 0
    %738 = vmatpush.bf16.msra.mxu0 %v724
    %739 = vmatpush.bf16.msra.mxu0 %v723
    %740 = vmatpush.bf16.msra.mxu0 %v722
    %741 = vmatpush.bf16.msra.mxu0 %v721
    %742 = vmatpush.bf16.msra.mxu0 %v720
    %743 = vmatpush.bf16.msra.mxu0 %v719
    %744 = vmatpush.bf16.msra.mxu0 %v718
    %745 = vmatpush.bf16.msra.mxu0 %v717
    %746 = vmatmul.bf16.gmra.mxu0 %v657
    %v747 = vpop.f32.mrf.mxu0
    %v748 = vadd.f32 %v679, %v747
    %v749 = vpop.f32.mrf.mxu0
    %750 = vdwg.mxu0
    %751 = vmatpush.bf16.msra.mxu0 0
    %752 = vmatpush.bf16.msra.mxu0 0
    %753 = vmatpush.bf16.msra.mxu0 0
    %754 = vmatpush.bf16.msra.mxu0 0
    %755 = vmatpush.bf16.msra.mxu0 0
    %756 = vmatpush.bf16.msra.mxu0 0
    %757 = vmatpush.bf16.msra.mxu0 0
    %758 = vmatpush.bf16.msra.mxu0 %v725
    %759 = vmatmul.bf16.gmra.mxu0 %v736
    %v760 = vpop.f32.mrf.mxu0
    %v761 = vadd.f32 %v748, %v760
    %v762 = vpop.f32.mrf.mxu0
    %763 = vdwg.mxu0
    %vm764 = vcmp.ge.f32.partialorder %v761, 0.0
    %v765 = vmul.f32 %v761, 0.01
    %v766 = vsel %vm764, %v761, %v765
    %v767 = vpack.c.bf16 %v766, %v766
    %v768 = vld [vmem:[%s7] sm:$0xf]
    %v769 = vld [vmem:[%s7 + $0x4] sm:$0xf]
    %v770 = vld [vmem:[%s7 + $0x8] sm:$0xf]
    %v771 = vld [vmem:[%s7 + $0xc] sm:$0xf]
    %v772 = vld [vmem:[%s7 + $0x10] sm:$0x3]
    %v773 = vld [vmem:[%s8] sm:$0x1]
    %v775 = vperm.slane %v773, 0
    %v782 = vunpack.c.l.b16 %v768
    %v783 = vunpack.c.l.b16 %v769
    %v784 = vunpack.c.l.b16 %v770
    %v785 = vunpack.c.l.b16 %v771
    %v786 = vunpack.c.l.b16 %v772
    %v787 = vpack.c.b16 %v783, %v782
    %v788 = vpack.c.b16 %v785, %v784
    %v789 = vpack.c.b16 %v786, %v786
    %vm792 = vcmask 293888
    %v794 = vsel %vm792, %v767, 0
    %vm796 = vcmask 1041408
    %v798 = vsel %vm796, %v789, 0
    %800 = vmatpush.bf16.msra.mxu0 0
    %801 = vmatpush.bf16.msra.mxu0 0
    %802 = vmatpush.bf16.msra.mxu0 0
    %803 = vmatpush.bf16.msra.mxu0 0
    %804 = vmatpush.bf16.msra.mxu0 0
    %805 = vmatpush.bf16.msra.mxu0 %v798
    %806 = vmatpush.bf16.msra.mxu0 %v788
    %807 = vmatpush.bf16.msra.mxu0 %v787
    %808 = vmatmul.bf16.gmra.mxu0 %v794
    %v809 = vpop.f32.mrf.mxu0
    %v810 = vadd.f32 %v775, %v809
    %v811 = vpop.f32.mrf.mxu0
    %812 = vdwg.mxu0
    %v813 = vpack.c.bf16 %v810, %v810
    %v814 = vld [vmem:[%s9] sm:$0xf]
    %v815 = vld [vmem:[%s9 + $0x4] sm:$0x1]
    %v816 = vld [vmem:[%s10] sm:$0x1]
    %v818 = vperm.slane %v816, 0
    %v822 = vunpack.c.l.b16 %v814
    %v823 = vunpack.c.l.b16 %v815
    %v824 = vpack.c.b16 %v823, %v822
    %vm825 = vcmask 72704
    %v827 = vsel %vm825, %v813, 0
    %vm829 = vcmask 1043456
    %vm830 = vcmask 1044480
    %v831 = vsel %vm829, 4294967295, 65535
    %v832 = vsel %vm830, %v831, 0
    %v834 = vand.u32 %v824, %v832
    %836 = vmatpush.bf16.msra.mxu0 0
    %837 = vmatpush.bf16.msra.mxu0 0
    %838 = vmatpush.bf16.msra.mxu0 0
    %839 = vmatpush.bf16.msra.mxu0 0
    %840 = vmatpush.bf16.msra.mxu0 0
    %841 = vmatpush.bf16.msra.mxu0 0
    %842 = vmatpush.bf16.msra.mxu0 0
    %843 = vmatpush.bf16.msra.mxu0 %v834
    %844 = vmatmul.bf16.gmra.mxu0 %v827
    %v845 = vpop.f32.mrf.mxu0
    %v846 = vadd.f32 %v818, %v845
    %v847 = vpop.f32.mrf.mxu0
    %848 = vdwg.mxu0
    %vm849 = vcmp.ge.f32.partialorder %v846, 0.0
    %v850 = vmul.f32 %v846, 0.01
    %v851 = vsel %vm849, %v846, %v850
    %v852 = vpack.c.bf16 %v851, %v851
    %v853 = vld [vmem:[%s11] sm:$0xf]
    %v854 = vld [vmem:[%s11 + $0x4] sm:$0xf]
    %v855 = vld [vmem:[%s11 + $0x8] sm:$0xf]
    %v856 = vld [vmem:[%s11 + $0xc] sm:$0xf]
    %v857 = vld [vmem:[%s11 + $0x10] sm:$0xf]
    %v858 = vld [vmem:[%s11 + $0x14] sm:$0xf]
    %v859 = vld [vmem:[%s11 + $0x18] sm:$0xf]
    %v860 = vld [vmem:[%s11 + $0x1c] sm:$0xf]
    %v861 = vld [vmem:[%s12] sm:$0x1]
    %v863 = vperm.slane %v861, 0
    %v873 = vunpack.c.l.b16 %v853
    %v874 = vunpack.c.l.b16 %v854
    %v875 = vunpack.c.l.b16 %v855
    %v876 = vunpack.c.l.b16 %v856
    %v877 = vunpack.c.l.b16 %v857
    %v878 = vunpack.c.l.b16 %v858
    %v879 = vunpack.c.l.b16 %v859
    %v880 = vunpack.c.l.b16 %v860
    %v881 = vpack.c.b16 %v874, %v873
    %v882 = vpack.c.b16 %v876, %v875
    %v883 = vpack.c.b16 %v878, %v877
    %v884 = vpack.c.b16 %v880, %v879
    %vm889 = vcmask 523264
    %v891 = vsel %vm889, %v852, 0
    %893 = vmatpush.bf16.msra.mxu0 0
    %894 = vmatpush.bf16.msra.mxu0 0
    %895 = vmatpush.bf16.msra.mxu0 0
    %896 = vmatpush.bf16.msra.mxu0 0
    %897 = vmatpush.bf16.msra.mxu0 %v884
    %898 = vmatpush.bf16.msra.mxu0 %v883
    %899 = vmatpush.bf16.msra.mxu0 %v882
    %900 = vmatpush.bf16.msra.mxu0 %v881
    %901 = vmatmul.bf16.gmra.mxu0 %v891
    %v902 = vpop.f32.mrf.mxu0
    %v903 = vadd.f32 %v863, %v902
    %v904 = vpop.f32.mrf.mxu0
    %905 = vdwg.mxu0
    %vm906 = vcmp.ge.f32.partialorder %v903, 0.0
    %v907 = vmul.f32 %v903, 0.01
    %v908 = vsel %vm906, %v903, %v907
    %v909 = vpack.c.bf16 %v908, %v908
    %v910 = vld [vmem:[%s13] sm:$0xf]
    %v911 = vld [vmem:[%s13 + $0x4] sm:$0xf]
    %v912 = vld [vmem:[%s13 + $0x8] sm:$0xf]
    %v913 = vld [vmem:[%s13 + $0xc] sm:$0xf]
    %v914 = vld [vmem:[%s14] sm:$0x1]
    %v916 = vperm.slane %v914, 0
    %v922 = vunpack.c.l.b16 %v910
    %v923 = vunpack.c.l.b16 %v911
    %v924 = vunpack.c.l.b16 %v912
    %v925 = vunpack.c.l.b16 %v913
    %v926 = vpack.c.b16 %v923, %v922
    %v927 = vpack.c.b16 %v925, %v924
    %v931 = vsel %vm569, %v909, 0
    %933 = vmatpush.bf16.msra.mxu0 0
    %934 = vmatpush.bf16.msra.mxu0 0
    %935 = vmatpush.bf16.msra.mxu0 0
    %936 = vmatpush.bf16.msra.mxu0 0
    %937 = vmatpush.bf16.msra.mxu0 0
    %938 = vmatpush.bf16.msra.mxu0 0
    %939 = vmatpush.bf16.msra.mxu0 %v927
    %940 = vmatpush.bf16.msra.mxu0 %v926
    %941 = vmatmul.bf16.gmra.mxu0 %v931
    %v942 = vpop.f32.mrf.mxu0
    %v943 = vadd.f32 %v916, %v942
    %v944 = vpop.f32.mrf.mxu0
    %945 = vdwg.mxu0
    %vm946 = vcmp.ge.f32.partialorder %v943, 0.0
    %v947 = vmul.f32 %v943, 0.01
    %v948 = vsel %vm946, %v943, %v947
    %v949 = vpack.c.bf16 %v948, %v948
    %v950 = vld [vmem:[%s15] sm:$0xf]
    %v951 = vld [vmem:[%s15 + $0x4] sm:$0xf]
    %v952 = vld [vmem:[%s16] sm:$0x1]
    %v954 = vperm.slane %v952, 0
    %v958 = vunpack.c.l.b16 %v950
    %v959 = vunpack.c.l.b16 %v951
    %v960 = vpack.c.b16 %v959, %v958
    %v963 = vsel %vm253, %v949, 0
    %965 = vmatpush.bf16.msra.mxu0 0
    %966 = vmatpush.bf16.msra.mxu0 0
    %967 = vmatpush.bf16.msra.mxu0 0
    %968 = vmatpush.bf16.msra.mxu0 0
    %969 = vmatpush.bf16.msra.mxu0 0
    %970 = vmatpush.bf16.msra.mxu0 0
    %971 = vmatpush.bf16.msra.mxu0 0
    %972 = vmatpush.bf16.msra.mxu0 %v960
    %973 = vmatmul.bf16.gmra.mxu0 %v963
    %v974 = vpop.f32.mrf.mxu0
    %v975 = vadd.f32 %v954, %v974
    %v976 = vpop.f32.mrf.mxu0
    %977 = vdwg.mxu0
    %v978 = vtanh.pop %v975
    %979 = vst [vmem:[#allocation2] sm:$0xff] %v978
    // Predicated region
    $region70: #{tpu_custom_call.1} parent=1 // pred_check
      _
    $region71: #{tpu_custom_call.1} parent=1 // pred_check_branch
      %981 = sbr.rel (0) target = $region73
    $region72: #{tpu_custom_call.1} parent=1 // pred_region
      %983 = vsyncadd [#allocation3], 0
      %s985 = sshll.u32 [#allocation2], 4
      %s986 = int_to_ptr.vmem [resolvable:$true] %s985
      %s987 = sshll.u32 %s17, 4
      %s988 = int_to_ptr.hbm [resolvable:$true] %s987
      %990 = dma.vmem_to_hbm [thread:$0]  %s986, 128, %s988, [#allocation3]
    $region73: #{tpu_custom_call.1} parent=1 // pred_fallthru
      _
    // Predicated region
    $region74: #{tpu_custom_call.1} parent=1 // pred_check
      _
    $region75: #{tpu_custom_call.1} parent=1 // pred_check_branch
      %992 = sbr.rel (0) target = $region77
    $region76: #{tpu_custom_call.1} parent=1 // pred_region
      %994 = dma.done [#allocation3], 128
    $region77: #{tpu_custom_call.1} parent=1 // pred_fallthru
      _
    %995 = vsyncpa [#allocation3], 1

</llo_original>
